<compile_context>
chip_gen: v5e
topology: v5e:2x2
jax: 0.10.0
libtpu: 0.0.40
codegen_flags: <defaults>
</compile_context>

<pallas_src>
import functools

import jax
import jax.numpy as jnp
from jax.experimental import pallas as pl
from jax.experimental.pallas import tpu as pltpu


def _pads(k1, dilation=1):
    if k1 % 2 == 0:
        return dilation * (k1 - 2) // 2 + 1, dilation * k1 // 2 + 1
    return dilation * (k1 - 1) // 2 + 1, dilation * (k1 - 1) // 2 + 1


def _blockdiag_conv(wa, wb):
    """Two PyTorch Conv1d weights (Cout, Cin, k) -> one block-diagonal im2col
    matmul weight of shape (k*2*Cin, 2*Cout).

    Row index = k*2*Cin + cc with cc<Cin the branch-a input channel and
    cc>=Cin the branch-b input channel; column index < Cout is the branch-a
    output channel, >= Cout the branch-b output channel.
    """
    Cout, Cin, k = wa.shape
    wa_t = jnp.transpose(wa, (2, 1, 0))             # (k, Cin, Cout)
    wb_t = jnp.transpose(wb, (2, 1, 0))
    z = jnp.zeros((k, Cin, Cout), wa.dtype)
    top = jnp.concatenate([wa_t, z], axis=2)        # branch-a rows
    bot = jnp.concatenate([z, wb_t], axis=2)        # branch-b rows
    return jnp.concatenate([top, bot], axis=1).reshape(k * 2 * Cin, 2 * Cout)


def _pair_branch(u, w1, b1, w2, b2, *, pad_l, pad_r, k1, k2, mxu_dtype,
                 neg_slope=0.01):
    """Two independent SCINet branches fused as block-diagonal matmuls.

    One branch sequence is: ReplicationPad1d -> Conv1d(k1) -> LeakyReLU ->
    (Dropout: inference identity) -> Conv1d(3) -> Tanh.

    u  : (B, L, 2C)   branch-a input on lanes [:C], branch-b input on [C:]
    w1 : (k1*2C, 2H)  block-diagonal im2col conv1 weights (mxu_dtype)
    b1 : (1, 2H)      f32
    w2 : (k2*2H, 2C)  block-diagonal im2col conv2 weights (mxu_dtype)
    b2 : (1, 2C)      f32
    returns (B, L, 2C): branch-a output on lanes [:C], branch-b on [C:].
    """
    B, L, CC = u.shape
    HH = b1.shape[-1]

    # ReplicationPad1d((pad_l, pad_r)) along time, per batch.
    left = jnp.broadcast_to(u[:, :1, :], (B, pad_l, CC))
    right = jnp.broadcast_to(u[:, L - 1:, :], (B, pad_r, CC))
    up = jnp.concatenate([left, u, right], axis=1).astype(mxu_dtype)  # (B,Lp,2C)
    L1 = L + pad_l + pad_r - (k1 - 1)

    # Conv1d(k1) for both branches as ONE im2col matmul; rows = (batch, time),
    # lanes = channels, so no input transpose is required.
    xu = jnp.concatenate([up[:, k:k + L1, :] for k in range(k1)], axis=2)
    y = jnp.dot(xu.reshape(B * L1, k1 * CC), w1,
                preferred_element_type=jnp.float32) + b1              # (B*L1,2H)
    y = jnp.maximum(y, neg_slope * y)                                 # LeakyReLU
    # TODO(synk): nn.Dropout(p) omitted (inference-mode identity).

    # Conv1d(3) for both branches as ONE im2col matmul.
    L2 = L1 - (k2 - 1)                                                # == L
    y3 = y.reshape(B, L1, HH).astype(mxu_dtype)
    yu = jnp.concatenate([y3[:, k:k + L2, :] for k in range(k2)], axis=2)
    z = jnp.dot(yu.reshape(B * L2, k2 * HH), w2,
                preferred_element_type=jnp.float32) + b2              # (B*L2,2C)
    return jnp.tanh(z).reshape(B, L2, CC)


def _interactor_kernel(x_ref, w1_ref, b1_ref, w2_ref, b2_ref,
                       even_out, odd_out,
                       *, pad_l, pad_r, k1, k2, mxu_dtype):
    B, L, CC = x_ref.shape
    C = CC // 2

    # Fused Splitting: x_ref[b, l, :C] = x[b, 2l, :] (even steps),
    # x_ref[b, l, C:] = x[b, 2l+1, :] (odd steps) -- contiguous lane slices.
    x = x_ref[...].astype(jnp.float32)                 # (B, L, 2C)
    xe = x[:, :, :C]
    xo = x[:, :, C:]

    w1 = w1_ref[...]                                   # (2, k1*2C, 2H) mxu_dtype
    b1 = b1_ref[...]                                   # (2, 1, 2H)     f32
    w2 = w2_ref[...]                                   # (2, k2*2H, 2C) mxu_dtype
    b2 = b2_ref[...]                                   # (2, 1, 2C)     f32

    br = functools.partial(_pair_branch, pad_l=pad_l, pad_r=pad_r,
                           k1=k1, k2=k2, mxu_dtype=mxu_dtype)

    # Interactor.forward, INN=True ("modified") path.
    # Pair 0: phi(x_even) on lanes [:C] and psi(x_odd) on lanes [C:].
    g = br(x, w1[0], b1[0], w2[0], b2[0])
    d = xo * jnp.exp(g[:, :, :C])                      # x_odd  * exp(phi(x_even))
    c = xe * jnp.exp(g[:, :, C:])                      # x_even * exp(psi(x_odd))

    # Pair 1: U(d) on lanes [:C] and P(c) on lanes [C:].
    dc = jnp.concatenate([d, c], axis=2)               # (B, L, 2C)
    h = br(dc, w1[1], b1[1], w2[1], b2[1])
    x_even_update = c + h[:, :, :C]
    x_odd_update = d - h[:, :, C:]
    # TODO(synk): INN=False path (d = odd - P(even); c = even + U(d)) not wired.

    # Single store per output in the module's NCL layout (B, C, T//2).
    even_out[...] = jnp.transpose(x_even_update, (0, 2, 1)).astype(even_out.dtype)
    odd_out[...] = jnp.transpose(x_odd_update, (0, 2, 1)).astype(odd_out.dtype)


def interactor_level(x, params, *, kernel_size, groups=1,
                     mxu_dtype=jnp.float32):
    """x: (B, T, C) like the PyTorch module.  Returns (x_even_update,
    x_odd_update), each (B, C, T//2) in NCL layout (as Interactor.forward)."""
    assert groups == 1  # TODO(synk): grouped Conv1d (groups > 1) not implemented.
    B, T, C = x.shape
    assert T % 2 == 0, "Splitting assumes an even sequence length"
    L = T // 2
    k1, k2 = kernel_size, 3
    pad_l, pad_r = _pads(k1)
    H = params["phi"]["w1"].shape[0]

    # Free metadata-only reshape; the even/odd split happens inside the kernel
    # via lane slices, so there is no XLA gather/transpose HBM round trip.
    x3 = x.reshape(B, L, 2 * C)

    # Block-diagonal merged weights: pair 0 = (phi, psi), pair 1 = (U, P).
    # Packed into 4 slabs -> 5 input DMAs total (was 17).
    w1_slab = jnp.stack([
        _blockdiag_conv(params["phi"]["w1"], params["psi"]["w1"]),
        _blockdiag_conv(params["U"]["w1"], params["P"]["w1"]),
    ]).astype(mxu_dtype)                                    # (2, k1*2C, 2H)
    w2_slab = jnp.stack([
        _blockdiag_conv(params["phi"]["w2"], params["psi"]["w2"]),
        _blockdiag_conv(params["U"]["w2"], params["P"]["w2"]),
    ]).astype(mxu_dtype)                                    # (2, k2*2H, 2C)
    b1_slab = jnp.stack([
        jnp.concatenate([params["phi"]["b1"], params["psi"]["b1"]]),
        jnp.concatenate([params["U"]["b1"], params["P"]["b1"]]),
    ]).astype(jnp.float32)[:, None, :]                      # (2, 1, 2H)
    b2_slab = jnp.stack([
        jnp.concatenate([params["phi"]["b2"], params["psi"]["b2"]]),
        jnp.concatenate([params["U"]["b2"], params["P"]["b2"]]),
    ]).astype(jnp.float32)[:, None, :]                      # (2, 1, 2C)

    operands = (x3, w1_slab, b1_slab, w2_slab, b2_slab)

    def full_spec(a):
        nd = a.ndim
        return pl.BlockSpec(a.shape, lambda i, _nd=nd: (0,) * _nd)

    in_specs = [full_spec(a) for a in operands]
    out_specs = [pl.BlockSpec((B, C, L), lambda i: (0, 0, 0)),
                 pl.BlockSpec((B, C, L), lambda i: (0, 0, 0))]
    out_shape = (jax.ShapeDtypeStruct((B, C, L), x.dtype),
                 jax.ShapeDtypeStruct((B, C, L), x.dtype))

    # Advisory cost hint so XLA schedules this tiny custom call sensibly.
    L1 = L + pad_l + pad_r - (k1 - 1)
    itemsize = jnp.dtype(x.dtype).itemsize
    flops = 2 * (2 * B * L1 * (k1 * 2 * C) * (2 * H)
                 + 2 * B * L * (k2 * 2 * H) * (2 * C))      # 2 merged pairs
    transcendentals = 6 * B * L * C                          # 4x tanh + 2x exp
    bytes_accessed = (x3.size + 2 * B * C * L) * itemsize + sum(
        int(a.size) * jnp.dtype(a.dtype).itemsize for a in operands[1:])

    kern = functools.partial(_interactor_kernel, pad_l=pad_l, pad_r=pad_r,
                             k1=k1, k2=k2, mxu_dtype=mxu_dtype)

    even, odd = pl.pallas_call(
        kern,
        out_shape=out_shape,
        grid_spec=pltpu.PrefetchScalarGridSpec(
            num_scalar_prefetch=0,
            # Whole (tiny) problem in one grid step; per-step overhead used to
            # dominate.  See TODOs at top for the v7x / large-shape plan.
            grid=(1,),
            in_specs=in_specs,
            out_specs=out_specs),
        compiler_params=pltpu.CompilerParams(
            dimension_semantics=("arbitrary",)),
        cost_estimate=pl.CostEstimate(flops=flops,
                                      transcendentals=transcendentals,
                                      bytes_accessed=bytes_accessed),
    )(*operands)
    return even, odd


# ----------------------------- pure-JAX reference -----------------------------

def _ref_branch(x, p, *, pad_l, pad_r, k1, k2):
    """Per-example branch on PyTorch-layout params (independent formulation)."""
    C, L = x.shape
    xpad = jnp.concatenate(
        [jnp.repeat(x[:, :1], pad_l, axis=1), x,
         jnp.repeat(x[:, -1:], pad_r, axis=1)], axis=1)
    L1 = xpad.shape[1] - (k1 - 1)
    xu = jnp.stack([xpad[:, k:k + L1] for k in range(k1)], axis=-1)  # (C,L1,k1)
    y = jnp.einsum('hck,ctk->ht', p["w1"], xu) + p["b1"][:, None]
    y = jnp.where(y > 0, y, 0.01 * y)
    L2 = L1 - (k2 - 1)
    yu = jnp.stack([y[:, k:k + L2] for k in range(k2)], axis=-1)     # (H,L2,k2)
    z = jnp.einsum('ohk,htk->ot', p["w2"], yu) + p["b2"][:, None]
    return jnp.tanh(z)


def reference(x, params, *, kernel_size):
    """Pure-JAX reference of the PyTorch InteractorLevel forward (INN=True)."""
    k1, k2 = kernel_size, 3
    pad_l, pad_r = _pads(k1)
    x_even = jnp.transpose(x[:, ::2, :], (0, 2, 1))   # (B, C, L)
    x_odd = jnp.transpose(x[:, 1::2, :], (0, 2, 1))

    def br(u, p):
        f = lambda uu: _ref_branch(uu, p, pad_l=pad_l, pad_r=pad_r, k1=k1, k2=k2)
        return jax.vmap(f)(u)

    d = x_odd * jnp.exp(br(x_even, params["phi"]))
    c = x_even * jnp.exp(br(x_odd, params["psi"]))
    return c + br(d, params["U"]), d - br(c, params["P"])


def init_params(key, C, hidden_size, k1, k2=3):
    """Deterministic, PyTorch-Conv1d-shaped synthetic parameters."""
    H = int(C * hidden_size)
    params = {}
    for name, kk in zip(("phi", "psi", "U", "P"), jax.random.split(key, 4)):
        kw1, kb1, kw2, kb2 = jax.random.split(kk, 4)
        b1 = 1.0 / (C * k1) ** 0.5
        b2 = 1.0 / (H * k2) ** 0.5
        params[name] = dict(
            w1=jax.random.uniform(kw1, (H, C, k1), jnp.float32, -b1, b1),
            b1=jax.random.uniform(kb1, (H,), jnp.float32, -b1, b1),
            w2=jax.random.uniform(kw2, (C, H, k2), jnp.float32, -b2, b2),
            b2=jax.random.uniform(kb2, (C,), jnp.float32, -b2, b2),
        )
    return params


if __name__ == "__main__":
    # in_planes=C=4, seq T=16, kernel=5, hidden_size=2, groups=1, INN=True,
    # dropout ignored (inference).
    B, T, C = 2, 16, 4
    hidden_size = 2
    kernel_size = 5

    key = jax.random.PRNGKey(0)
    k_x, k_p = jax.random.split(key)
    x = jax.random.normal(k_x, (B, T, C), jnp.float32)
    params = init_params(k_p, C, hidden_size, kernel_size)

    # f32 MXU operands (default; exact path, tight check).
    even, odd = interactor_level(x, params, kernel_size=kernel_size)
    jax.block_until_ready((even, odd))

    ref_even, ref_odd = reference(x, params, kernel_size=kernel_size)
    assert even.shape == (B, C, T // 2) and odd.shape == (B, C, T // 2)
    assert jnp.allclose(even, ref_even, atol=1e-5, rtol=1e-5)
    assert jnp.allclose(odd, ref_odd, atol=1e-5, rtol=1e-5)

    # bf16 MXU operands (v6e/v7x opt-in): f32 accumulation + f32 elementwise,
    # verified loosely against the f32 reference.
    even_bf, odd_bf = interactor_level(x, params, kernel_size=kernel_size,
                                       mxu_dtype=jnp.bfloat16)
    jax.block_until_ready((even_bf, odd_bf))
    assert float(jnp.max(jnp.abs(even_bf - ref_even))) < 0.25
    assert float(jnp.max(jnp.abs(odd_bf - ref_odd))) < 0.25

    print("KERNEL_OK")
</pallas_src>

<mosaic_0001>
module attributes {stable_mosaic.version = 11 : i64} {
  func.func @_interactor_kernel(%arg0: i32, %arg1: memref<2x8x8xf32, #tpu.memory_space<vmem>>, %arg2: memref<2x40x16xf32, #tpu.memory_space<vmem>>, %arg3: memref<2x1x16xf32, #tpu.memory_space<vmem>>, %arg4: memref<2x48x8xf32, #tpu.memory_space<vmem>>, %arg5: memref<2x1x8xf32, #tpu.memory_space<vmem>>, %arg6: memref<2x4x8xf32, #tpu.memory_space<vmem>>, %arg7: memref<2x4x8xf32, #tpu.memory_space<vmem>>) attributes {dimension_semantics = [#tpu.dimension_semantics<arbitrary>], iteration_bounds = array<i64: 1>, scalar_prefetch = 0 : i64, scratch_operands = 0 : i64, tpu.core_type = #tpu.core_type<tc>, window_params = [{pipeline_mode = #tpu.pipeline_mode<synchronous>, transform_indices = @transform_0, window_bounds = array<i64: 2, 8, 8>}, {pipeline_mode = #tpu.pipeline_mode<synchronous>, transform_indices = @transform_1, window_bounds = array<i64: 2, 40, 16>}, {pipeline_mode = #tpu.pipeline_mode<synchronous>, transform_indices = @transform_2, window_bounds = array<i64: 2, 1, 16>}, {pipeline_mode = #tpu.pipeline_mode<synchronous>, transform_indices = @transform_3, window_bounds = array<i64: 2, 48, 8>}, {pipeline_mode = #tpu.pipeline_mode<synchronous>, transform_indices = @transform_4, window_bounds = array<i64: 2, 1, 8>}, {pipeline_mode = #tpu.pipeline_mode<synchronous>, transform_indices = @transform_5, window_bounds = array<i64: 2, 4, 8>}, {pipeline_mode = #tpu.pipeline_mode<synchronous>, transform_indices = @transform_6, window_bounds = array<i64: 2, 4, 8>}]} {
    %c0 = arith.constant 0 : index
    %c0_0 = arith.constant 0 : index
    %c0_1 = arith.constant 0 : index
    %0 = vector.load %arg1[%c0, %c0_0, %c0_1] : memref<2x8x8xf32, #tpu.memory_space<vmem>>, vector<2x8x8xf32>
    %1 = vector.extract_strided_slice %0 {offsets = [0, 0, 0], sizes = [2, 8, 4], strides = [1, 1, 1]} : vector<2x8x8xf32> to vector<2x8x4xf32>
    %2 = vector.extract_strided_slice %0 {offsets = [0, 0, 4], sizes = [2, 8, 4], strides = [1, 1, 1]} : vector<2x8x8xf32> to vector<2x8x4xf32>
    %c0_2 = arith.constant 0 : index
    %c0_3 = arith.constant 0 : index
    %c0_4 = arith.constant 0 : index
    %3 = vector.load %arg2[%c0_2, %c0_3, %c0_4] : memref<2x40x16xf32, #tpu.memory_space<vmem>>, vector<2x40x16xf32>
    %c0_5 = arith.constant 0 : index
    %c0_6 = arith.constant 0 : index
    %c0_7 = arith.constant 0 : index
    %4 = vector.load %arg3[%c0_5, %c0_6, %c0_7] : memref<2x1x16xf32, #tpu.memory_space<vmem>>, vector<2x1x16xf32>
    %c0_8 = arith.constant 0 : index
    %c0_9 = arith.constant 0 : index
    %c0_10 = arith.constant 0 : index
    %5 = vector.load %arg4[%c0_8, %c0_9, %c0_10] : memref<2x48x8xf32, #tpu.memory_space<vmem>>, vector<2x48x8xf32>
    %c0_11 = arith.constant 0 : index
    %c0_12 = arith.constant 0 : index
    %c0_13 = arith.constant 0 : index
    %6 = vector.load %arg5[%c0_11, %c0_12, %c0_13] : memref<2x1x8xf32, #tpu.memory_space<vmem>>, vector<2x1x8xf32>
    %7 = vector.extract_strided_slice %3 {offsets = [0, 0, 0], sizes = [1, 40, 16], strides = [1, 1, 1]} : vector<2x40x16xf32> to vector<1x40x16xf32>
    %8 = vector.shape_cast %7 : vector<1x40x16xf32> to vector<40x16xf32>
    %9 = vector.extract_strided_slice %4 {offsets = [0, 0, 0], sizes = [1, 1, 16], strides = [1, 1, 1]} : vector<2x1x16xf32> to vector<1x1x16xf32>
    %10 = vector.shape_cast %9 : vector<1x1x16xf32> to vector<1x16xf32>
    %11 = vector.extract_strided_slice %5 {offsets = [0, 0, 0], sizes = [1, 48, 8], strides = [1, 1, 1]} : vector<2x48x8xf32> to vector<1x48x8xf32>
    %12 = vector.shape_cast %11 : vector<1x48x8xf32> to vector<48x8xf32>
    %13 = vector.extract_strided_slice %6 {offsets = [0, 0, 0], sizes = [1, 1, 8], strides = [1, 1, 1]} : vector<2x1x8xf32> to vector<1x1x8xf32>
    %14 = vector.shape_cast %13 : vector<1x1x8xf32> to vector<1x8xf32>
    %15 = vector.extract_strided_slice %0 {offsets = [0, 0, 0], sizes = [2, 1, 8], strides = [1, 1, 1]} : vector<2x8x8xf32> to vector<2x1x8xf32>
    %16 = vector.shape_cast %15 : vector<2x1x8xf32> to vector<2x1x8xf32>
    %17 = vector.broadcast %16 : vector<2x1x8xf32> to vector<2x3x8xf32>
    %18 = vector.extract_strided_slice %0 {offsets = [0, 7, 0], sizes = [2, 1, 8], strides = [1, 1, 1]} : vector<2x8x8xf32> to vector<2x1x8xf32>
    %19 = vector.shape_cast %18 : vector<2x1x8xf32> to vector<2x1x8xf32>
    %20 = vector.broadcast %19 : vector<2x1x8xf32> to vector<2x3x8xf32>
    %21 = tpu.concatenate %17, %0, %20 in 1 : vector<2x3x8xf32>, vector<2x8x8xf32>, vector<2x3x8xf32> -> vector<2x14x8xf32>
    %22 = vector.extract_strided_slice %21 {offsets = [0, 0, 0], sizes = [2, 10, 8], strides = [1, 1, 1]} : vector<2x14x8xf32> to vector<2x10x8xf32>
    %23 = vector.extract_strided_slice %21 {offsets = [0, 1, 0], sizes = [2, 10, 8], strides = [1, 1, 1]} : vector<2x14x8xf32> to vector<2x10x8xf32>
    %24 = vector.extract_strided_slice %21 {offsets = [0, 2, 0], sizes = [2, 10, 8], strides = [1, 1, 1]} : vector<2x14x8xf32> to vector<2x10x8xf32>
    %25 = vector.extract_strided_slice %21 {offsets = [0, 3, 0], sizes = [2, 10, 8], strides = [1, 1, 1]} : vector<2x14x8xf32> to vector<2x10x8xf32>
    %26 = vector.extract_strided_slice %21 {offsets = [0, 4, 0], sizes = [2, 10, 8], strides = [1, 1, 1]} : vector<2x14x8xf32> to vector<2x10x8xf32>
    %27 = tpu.concatenate %22, %23, %24, %25, %26 in 2 : vector<2x10x8xf32>, vector<2x10x8xf32>, vector<2x10x8xf32>, vector<2x10x8xf32>, vector<2x10x8xf32> -> vector<2x10x40xf32>
    %28 = vector.shape_cast %27 : vector<2x10x40xf32> to vector<20x40xf32>
    %cst = arith.constant dense<0.000000e+00> : vector<20x16xf32>
    %29 = tpu.matmul %28, %8, %cst {dimension_numbers = #tpu.dot_dimension_numbers<[1], [0], [0], [1], [0, 0, 1, 1], [], []>} : vector<20x40xf32>, vector<40x16xf32>, vector<20x16xf32> -> vector<20x16xf32>
    %30 = vector.broadcast %10 : vector<1x16xf32> to vector<20x16xf32>
    %31 = arith.addf %29, %30 : vector<20x16xf32>
    %cst_14 = arith.constant 0.00999999977 : f32
    %32 = vector.broadcast %cst_14 : f32 to vector<20x16xf32>
    %33 = arith.mulf %32, %31 : vector<20x16xf32>
    %34 = arith.maximumf %31, %33 : vector<20x16xf32>
    %35 = vector.shape_cast %34 : vector<20x16xf32> to vector<2x10x16xf32>
    %36 = vector.extract_strided_slice %35 {offsets = [0, 0, 0], sizes = [2, 8, 16], strides = [1, 1, 1]} : vector<2x10x16xf32> to vector<2x8x16xf32>
    %37 = vector.extract_strided_slice %35 {offsets = [0, 1, 0], sizes = [2, 8, 16], strides = [1, 1, 1]} : vector<2x10x16xf32> to vector<2x8x16xf32>
    %38 = vector.extract_strided_slice %35 {offsets = [0, 2, 0], sizes = [2, 8, 16], strides = [1, 1, 1]} : vector<2x10x16xf32> to vector<2x8x16xf32>
    %39 = tpu.concatenate %36, %37, %38 in 2 : vector<2x8x16xf32>, vector<2x8x16xf32>, vector<2x8x16xf32> -> vector<2x8x48xf32>
    %40 = vector.shape_cast %39 : vector<2x8x48xf32> to vector<16x48xf32>
    %cst_15 = arith.constant dense<0.000000e+00> : vector<16x8xf32>
    %41 = tpu.matmul %40, %12, %cst_15 {dimension_numbers = #tpu.dot_dimension_numbers<[1], [0], [0], [1], [0, 0, 1, 1], [], []>} : vector<16x48xf32>, vector<48x8xf32>, vector<16x8xf32> -> vector<16x8xf32>
    %42 = vector.broadcast %14 : vector<1x8xf32> to vector<16x8xf32>
    %43 = arith.addf %41, %42 : vector<16x8xf32>
    %44 = math.tanh %43 : vector<16x8xf32>
    %45 = vector.shape_cast %44 : vector<16x8xf32> to vector<2x8x8xf32>
    %46 = vector.extract_strided_slice %45 {offsets = [0, 0, 0], sizes = [2, 8, 4], strides = [1, 1, 1]} : vector<2x8x8xf32> to vector<2x8x4xf32>
    %47 = math.exp %46 : vector<2x8x4xf32>
    %48 = arith.mulf %2, %47 : vector<2x8x4xf32>
    %49 = vector.extract_strided_slice %45 {offsets = [0, 0, 4], sizes = [2, 8, 4], strides = [1, 1, 1]} : vector<2x8x8xf32> to vector<2x8x4xf32>
    %50 = math.exp %49 : vector<2x8x4xf32>
    %51 = arith.mulf %1, %50 : vector<2x8x4xf32>
    %52 = tpu.concatenate %48, %51 in 2 : vector<2x8x4xf32>, vector<2x8x4xf32> -> vector<2x8x8xf32>
    %53 = vector.extract_strided_slice %3 {offsets = [1, 0, 0], sizes = [1, 40, 16], strides = [1, 1, 1]} : vector<2x40x16xf32> to vector<1x40x16xf32>
    %54 = vector.shape_cast %53 : vector<1x40x16xf32> to vector<40x16xf32>
    %55 = vector.extract_strided_slice %4 {offsets = [1, 0, 0], sizes = [1, 1, 16], strides = [1, 1, 1]} : vector<2x1x16xf32> to vector<1x1x16xf32>
    %56 = vector.shape_cast %55 : vector<1x1x16xf32> to vector<1x16xf32>
    %57 = vector.extract_strided_slice %5 {offsets = [1, 0, 0], sizes = [1, 48, 8], strides = [1, 1, 1]} : vector<2x48x8xf32> to vector<1x48x8xf32>
    %58 = vector.shape_cast %57 : vector<1x48x8xf32> to vector<48x8xf32>
    %59 = vector.extract_strided_slice %6 {offsets = [1, 0, 0], sizes = [1, 1, 8], strides = [1, 1, 1]} : vector<2x1x8xf32> to vector<1x1x8xf32>
    %60 = vector.shape_cast %59 : vector<1x1x8xf32> to vector<1x8xf32>
    %61 = vector.extract_strided_slice %52 {offsets = [0, 0, 0], sizes = [2, 1, 8], strides = [1, 1, 1]} : vector<2x8x8xf32> to vector<2x1x8xf32>
    %62 = vector.shape_cast %61 : vector<2x1x8xf32> to vector<2x1x8xf32>
    %63 = vector.broadcast %62 : vector<2x1x8xf32> to vector<2x3x8xf32>
    %64 = vector.extract_strided_slice %52 {offsets = [0, 7, 0], sizes = [2, 1, 8], strides = [1, 1, 1]} : vector<2x8x8xf32> to vector<2x1x8xf32>
    %65 = vector.shape_cast %64 : vector<2x1x8xf32> to vector<2x1x8xf32>
    %66 = vector.broadcast %65 : vector<2x1x8xf32> to vector<2x3x8xf32>
    %67 = tpu.concatenate %63, %52, %66 in 1 : vector<2x3x8xf32>, vector<2x8x8xf32>, vector<2x3x8xf32> -> vector<2x14x8xf32>
    %68 = vector.extract_strided_slice %67 {offsets = [0, 0, 0], sizes = [2, 10, 8], strides = [1, 1, 1]} : vector<2x14x8xf32> to vector<2x10x8xf32>
    %69 = vector.extract_strided_slice %67 {offsets = [0, 1, 0], sizes = [2, 10, 8], strides = [1, 1, 1]} : vector<2x14x8xf32> to vector<2x10x8xf32>
    %70 = vector.extract_strided_slice %67 {offsets = [0, 2, 0], sizes = [2, 10, 8], strides = [1, 1, 1]} : vector<2x14x8xf32> to vector<2x10x8xf32>
    %71 = vector.extract_strided_slice %67 {offsets = [0, 3, 0], sizes = [2, 10, 8], strides = [1, 1, 1]} : vector<2x14x8xf32> to vector<2x10x8xf32>
    %72 = vector.extract_strided_slice %67 {offsets = [0, 4, 0], sizes = [2, 10, 8], strides = [1, 1, 1]} : vector<2x14x8xf32> to vector<2x10x8xf32>
    %73 = tpu.concatenate %68, %69, %70, %71, %72 in 2 : vector<2x10x8xf32>, vector<2x10x8xf32>, vector<2x10x8xf32>, vector<2x10x8xf32>, vector<2x10x8xf32> -> vector<2x10x40xf32>
    %74 = vector.shape_cast %73 : vector<2x10x40xf32> to vector<20x40xf32>
    %cst_16 = arith.constant dense<0.000000e+00> : vector<20x16xf32>
    %75 = tpu.matmul %74, %54, %cst_16 {dimension_numbers = #tpu.dot_dimension_numbers<[1], [0], [0], [1], [0, 0, 1, 1], [], []>} : vector<20x40xf32>, vector<40x16xf32>, vector<20x16xf32> -> vector<20x16xf32>
    %76 = vector.broadcast %56 : vector<1x16xf32> to vector<20x16xf32>
    %77 = arith.addf %75, %76 : vector<20x16xf32>
    %cst_17 = arith.constant 0.00999999977 : f32
    %78 = vector.broadcast %cst_17 : f32 to vector<20x16xf32>
    %79 = arith.mulf %78, %77 : vector<20x16xf32>
    %80 = arith.maximumf %77, %79 : vector<20x16xf32>
    %81 = vector.shape_cast %80 : vector<20x16xf32> to vector<2x10x16xf32>
    %82 = vector.extract_strided_slice %81 {offsets = [0, 0, 0], sizes = [2, 8, 16], strides = [1, 1, 1]} : vector<2x10x16xf32> to vector<2x8x16xf32>
    %83 = vector.extract_strided_slice %81 {offsets = [0, 1, 0], sizes = [2, 8, 16], strides = [1, 1, 1]} : vector<2x10x16xf32> to vector<2x8x16xf32>
    %84 = vector.extract_strided_slice %81 {offsets = [0, 2, 0], sizes = [2, 8, 16], strides = [1, 1, 1]} : vector<2x10x16xf32> to vector<2x8x16xf32>
    %85 = tpu.concatenate %82, %83, %84 in 2 : vector<2x8x16xf32>, vector<2x8x16xf32>, vector<2x8x16xf32> -> vector<2x8x48xf32>
    %86 = vector.shape_cast %85 : vector<2x8x48xf32> to vector<16x48xf32>
    %cst_18 = arith.constant dense<0.000000e+00> : vector<16x8xf32>
    %87 = tpu.matmul %86, %58, %cst_18 {dimension_numbers = #tpu.dot_dimension_numbers<[1], [0], [0], [1], [0, 0, 1, 1], [], []>} : vector<16x48xf32>, vector<48x8xf32>, vector<16x8xf32> -> vector<16x8xf32>
    %88 = vector.broadcast %60 : vector<1x8xf32> to vector<16x8xf32>
    %89 = arith.addf %87, %88 : vector<16x8xf32>
    %90 = math.tanh %89 : vector<16x8xf32>
    %91 = vector.shape_cast %90 : vector<16x8xf32> to vector<2x8x8xf32>
    %92 = vector.extract_strided_slice %91 {offsets = [0, 0, 0], sizes = [2, 8, 4], strides = [1, 1, 1]} : vector<2x8x8xf32> to vector<2x8x4xf32>
    %93 = arith.addf %51, %92 : vector<2x8x4xf32>
    %94 = vector.extract_strided_slice %91 {offsets = [0, 0, 4], sizes = [2, 8, 4], strides = [1, 1, 1]} : vector<2x8x8xf32> to vector<2x8x4xf32>
    %95 = arith.subf %48, %94 : vector<2x8x4xf32>
    %96 = tpu.transpose %93, [0, 2, 1] : vector<2x8x4xf32> -> vector<2x4x8xf32>
    %c0_19 = arith.constant 0 : index
    %c0_20 = arith.constant 0 : index
    %c0_21 = arith.constant 0 : index
    %97 = vector.load %arg6[%c0_19, %c0_20, %c0_21] : memref<2x4x8xf32, #tpu.memory_space<vmem>>, vector<2x4x8xf32>
    tpu.vector_store %arg6[%c0_19, %c0_20, %c0_21], %96 {strides = array<i32>} : memref<2x4x8xf32, #tpu.memory_space<vmem>>, vector<2x4x8xf32>,
    %98 = tpu.transpose %95, [0, 2, 1] : vector<2x8x4xf32> -> vector<2x4x8xf32>
    %c0_22 = arith.constant 0 : index
    %c0_23 = arith.constant 0 : index
    %c0_24 = arith.constant 0 : index
    %99 = vector.load %arg7[%c0_22, %c0_23, %c0_24] : memref<2x4x8xf32, #tpu.memory_space<vmem>>, vector<2x4x8xf32>
    tpu.vector_store %arg7[%c0_22, %c0_23, %c0_24], %98 {strides = array<i32>} : memref<2x4x8xf32, #tpu.memory_space<vmem>>, vector<2x4x8xf32>,
    return
  }
  func.func @transform_0(%arg0: i32) -> (i32, i32, i32) {
    %c0_i32 = arith.constant 0 : i32
    %c0_i32_0 = arith.constant 0 : i32
    %c0_i32_1 = arith.constant 0 : i32
    %c0_i32_2 = arith.constant 0 : i32
    return %c0_i32, %c0_i32_0, %c0_i32_1 : i32, i32, i32
  }
  func.func @transform_1(%arg0: i32) -> (i32, i32, i32) {
    %c0_i32 = arith.constant 0 : i32
    %c0_i32_0 = arith.constant 0 : i32
    %c0_i32_1 = arith.constant 0 : i32
    %c0_i32_2 = arith.constant 0 : i32
    return %c0_i32, %c0_i32_0, %c0_i32_1 : i32, i32, i32
  }
  func.func @transform_2(%arg0: i32) -> (i32, i32, i32) {
    %c0_i32 = arith.constant 0 : i32
    %c0_i32_0 = arith.constant 0 : i32
    %c0_i32_1 = arith.constant 0 : i32
    %c0_i32_2 = arith.constant 0 : i32
    return %c0_i32, %c0_i32_0, %c0_i32_1 : i32, i32, i32
  }
  func.func @transform_3(%arg0: i32) -> (i32, i32, i32) {
    %c0_i32 = arith.constant 0 : i32
    %c0_i32_0 = arith.constant 0 : i32
    %c0_i32_1 = arith.constant 0 : i32
    %c0_i32_2 = arith.constant 0 : i32
    return %c0_i32, %c0_i32_0, %c0_i32_1 : i32, i32, i32
  }
  func.func @transform_4(%arg0: i32) -> (i32, i32, i32) {
    %c0_i32 = arith.constant 0 : i32
    %c0_i32_0 = arith.constant 0 : i32
    %c0_i32_1 = arith.constant 0 : i32
    %c0_i32_2 = arith.constant 0 : i32
    return %c0_i32, %c0_i32_0, %c0_i32_1 : i32, i32, i32
  }
  func.func @transform_5(%arg0: i32) -> (i32, i32, i32) {
    %c0_i32 = arith.constant 0 : i32
    %c0_i32_0 = arith.constant 0 : i32
    %c0_i32_1 = arith.constant 0 : i32
    %c0_i32_2 = arith.constant 0 : i32
    return %c0_i32, %c0_i32_0, %c0_i32_1 : i32, i32, i32
  }
  func.func @transform_6(%arg0: i32) -> (i32, i32, i32) {
    %c0_i32 = arith.constant 0 : i32
    %c0_i32_0 = arith.constant 0 : i32
    %c0_i32_1 = arith.constant 0 : i32
    %c0_i32_2 = arith.constant 0 : i32
    return %c0_i32, %c0_i32_0, %c0_i32_1 : i32, i32, i32
  }
}

</mosaic_0001>

<llo_original>
// kernel: tpu_custom_call.1
$region0: #{tpu_custom_call.1}
  #allocation0 [shape = 'u32[]', space=smem, size = 0x4, offset = 0x4, fixed_abs, tag = 'smem constant byte address 0x4 - core index']
  #allocation1 [shape = 'u32[72,128]{1,0:T(1,128)}', space=vmem, size = 0x9000, scoped, tag = 'internal scratch']
  %s0 = inlined_call_operand.vmem [shape: f32[2,8,8], index: 0, kind: input, shape index: {}]
  %s1 = inlined_call_operand.vmem [shape: f32[2,40,16], index: 1, kind: input, shape index: {}]
  %s2 = inlined_call_operand.vmem [shape: f32[2,1,16], index: 2, kind: input, shape index: {}]
  %s3 = inlined_call_operand.vmem [shape: f32[2,48,8], index: 3, kind: input, shape index: {}]
  %s4 = inlined_call_operand.vmem [shape: f32[2,1,8], index: 4, kind: input, shape index: {}]
  %s5 = inlined_call_operand.hbm [shape: f32[2,4,8], index: 5, kind: output, shape index: {0}]
  %s6 = inlined_call_operand.hbm [shape: f32[2,4,8], index: 6, kind: output, shape index: {1}]
  %7 = xla_tuple %s5, %s6
  %s8 = sld [smem:[#allocation0]]
  $region38: #{tpu_custom_call.1} parent=0
    _
  %s10 = ssub.s32 1, %s8
  %s11 = scalar_select 0, %s10, %s8
  $region1: #{tpu_custom_call.1} parent=0
    #allocation2 [shape = 'u8[4096]{0}', space=vmem, size = 0x1000, scoped, tag = 'output window, operand 0, single buffered']
    #allocation3 [shape = 's32[1]{0}', space=sflag, size = 0x4, scoped, tag = 'scoped memory for tpu_custom_call.1']
    #allocation4 [shape = 'u8[4096]{0}', space=vmem, size = 0x1000, scoped, tag = 'output window, operand 1, single buffered']
    #allocation5 [shape = 's32[1]{0}', space=sflag, size = 0x4, scoped, tag = 'scoped memory for tpu_custom_call.1']
    %12 = vsyncpa [#allocation3], 0
    %13 = vsyncpa [#allocation5], 0
    // Predicated region
    $region2: #{tpu_custom_call.1} parent=1 // pred_check
      _
    $region3: #{tpu_custom_call.1} parent=1 // pred_check_branch
      %15 = sbr.rel (0) target = $region5
    $region4: #{tpu_custom_call.1} parent=1 // pred_region
      _
    $region5: #{tpu_custom_call.1} parent=1 // pred_fallthru
      _
    // Predicated region
    $region6: #{tpu_custom_call.1} parent=1 // pred_check
      _
    $region7: #{tpu_custom_call.1} parent=1 // pred_check_branch
      %17 = sbr.rel (0) target = $region9
    $region8: #{tpu_custom_call.1} parent=1 // pred_region
      _
    $region9: #{tpu_custom_call.1} parent=1 // pred_fallthru
      _
    // Predicated region
    $region10: #{tpu_custom_call.1} parent=1 // pred_check
      _
    $region11: #{tpu_custom_call.1} parent=1 // pred_check_branch
      %19 = sbr.rel (0) target = $region13
    $region12: #{tpu_custom_call.1} parent=1 // pred_region
      _
    $region13: #{tpu_custom_call.1} parent=1 // pred_fallthru
      _
    // Predicated region
    $region14: #{tpu_custom_call.1} parent=1 // pred_check
      _
    $region15: #{tpu_custom_call.1} parent=1 // pred_check_branch
      %21 = sbr.rel (0) target = $region17
    $region16: #{tpu_custom_call.1} parent=1 // pred_region
      _
    $region17: #{tpu_custom_call.1} parent=1 // pred_fallthru
      _
    // Predicated region
    $region18: #{tpu_custom_call.1} parent=1 // pred_check
      _
    $region19: #{tpu_custom_call.1} parent=1 // pred_check_branch
      %23 = sbr.rel (0) target = $region21
    $region20: #{tpu_custom_call.1} parent=1 // pred_region
      _
    $region21: #{tpu_custom_call.1} parent=1 // pred_fallthru
      _
    %v24 = vld [vmem:[%s0] sm:$0xff]
    %v25 = vld [vmem:[%s0 + $0x8] sm:$0xff]
    %v26 = vld [vmem:[%s1] sm:$0xff]
    %v27 = vld [vmem:[%s1 + $0x8] sm:$0xff]
    %v28 = vld [vmem:[%s1 + $0x10] sm:$0xff]
    %v29 = vld [vmem:[%s1 + $0x18] sm:$0xff]
    %v30 = vld [vmem:[%s1 + $0x20] sm:$0xff]
    %v31 = vld [vmem:[%s1 + $0x28] sm:$0xff]
    %v32 = vld [vmem:[%s1 + $0x30] sm:$0xff]
    %v33 = vld [vmem:[%s1 + $0x38] sm:$0xff]
    %v34 = vld [vmem:[%s1 + $0x40] sm:$0xff]
    %v35 = vld [vmem:[%s1 + $0x48] sm:$0xff]
    %v36 = vld [vmem:[%s2] sm:$0x1]
    %v37 = vld [vmem:[%s2 + $0x1] sm:$0x1]
    %v38 = vld [vmem:[%s3] sm:$0xff]
    %v39 = vld [vmem:[%s3 + $0x8] sm:$0xff]
    %v40 = vld [vmem:[%s3 + $0x10] sm:$0xff]
    %v41 = vld [vmem:[%s3 + $0x18] sm:$0xff]
    %v42 = vld [vmem:[%s3 + $0x20] sm:$0xff]
    %v43 = vld [vmem:[%s3 + $0x28] sm:$0xff]
    %v44 = vld [vmem:[%s3 + $0x30] sm:$0xff]
    %v45 = vld [vmem:[%s3 + $0x38] sm:$0xff]
    %v46 = vld [vmem:[%s3 + $0x40] sm:$0xff]
    %v47 = vld [vmem:[%s3 + $0x48] sm:$0xff]
    %v48 = vld [vmem:[%s3 + $0x50] sm:$0xff]
    %v49 = vld [vmem:[%s3 + $0x58] sm:$0xff]
    %v50 = vld [vmem:[%s4] sm:$0x1]
    %v51 = vld [vmem:[%s4 + $0x1] sm:$0x1]
    %v52 = vperm.slane %v24, 0
    %v53 = vperm.slane %v25, 0
    %v54 = vperm.slane %v24, 7
    %v55 = vperm.slane %v25, 7
    %v58 = vrot.slane %v24, 5
    %v59 = vrot.slane %v25, 5
    %vm62 = vcmask 1042432
    %v63 = vsel %vm62, %v52, %v58
    %v64 = vsel %vm62, %v53, %v59
    %v65 = vsel %vm62, %v58, %v54
    %v66 = vsel %vm62, %v59, %v55
    %vm71 = vcmask 1046528
    %v72 = vrot.slane %v63, 1
    %v73 = vrot.slane %v65, 1
    %v74 = vsel %vm71, %v72, %v73
    %v75 = vrot.slane %v64, 1
    %v76 = vrot.slane %v66, 1
    %v77 = vsel %vm71, %v75, %v76
    %78 = vrot.lane.b32.xlu0 %v74, 8
    %v79 = vpop.permute.xlu0 %78
    %80 = vrot.lane.b32.xlu0 %v73, 8
    %v81 = vpop.permute.xlu0 %80
    %82 = vrot.lane.b32.xlu0 %v77, 8
    %v83 = vpop.permute.xlu0 %82
    %84 = vrot.lane.b32.xlu0 %v76, 8
    %v85 = vpop.permute.xlu0 %84
    %vm90 = vcmask 1045504
    %v91 = vrot.slane %v63, 2
    %v92 = vrot.slane %v65, 2
    %v93 = vsel %vm90, %v91, %v92
    %v94 = vrot.slane %v64, 2
    %v95 = vrot.slane %v66, 2
    %v96 = vsel %vm90, %v94, %v95
    %97 = vrot.lane.b32.xlu0 %v93, 16
    %v98 = vpop.permute.xlu0 %97
    %99 = vrot.lane.b32.xlu0 %v92, 16
    %v100 = vpop.permute.xlu0 %99
    %101 = vrot.lane.b32.xlu0 %v96, 16
    %v102 = vpop.permute.xlu0 %101
    %103 = vrot.lane.b32.xlu0 %v95, 16
    %v104 = vpop.permute.xlu0 %103
    %vm109 = vcmask 1044480
    %v110 = vrot.slane %v63, 3
    %v111 = vrot.slane %v65, 3
    %v112 = vsel %vm109, %v110, %v111
    %v113 = vrot.slane %v64, 3
    %v114 = vrot.slane %v66, 3
    %v115 = vsel %vm109, %v113, %v114
    %116 = vrot.lane.b32.xlu0 %v112, 24
    %v117 = vpop.permute.xlu0 %116
    %118 = vrot.lane.b32.xlu0 %v111, 24
    %v119 = vpop.permute.xlu0 %118
    %120 = vrot.lane.b32.xlu0 %v115, 24
    %v121 = vpop.permute.xlu0 %120
    %122 = vrot.lane.b32.xlu0 %v114, 24
    %v123 = vpop.permute.xlu0 %122
    %vm128 = vcmask 1043456
    %v129 = vrot.slane %v63, 4
    %v130 = vrot.slane %v65, 4
    %v131 = vsel %vm128, %v129, %v130
    %v132 = vrot.slane %v64, 4
    %v133 = vrot.slane %v66, 4
    %v134 = vsel %vm128, %v132, %v133
    %135 = vrot.lane.b32.xlu0 %v131, 32
    %v136 = vpop.permute.xlu0 %135
    %137 = vrot.lane.b32.xlu0 %v130, 32
    %v138 = vpop.permute.xlu0 %137
    %139 = vrot.lane.b32.xlu0 %v134, 32
    %v140 = vpop.permute.xlu0 %139
    %141 = vrot.lane.b32.xlu0 %v133, 32
    %v142 = vpop.permute.xlu0 %141
    %vm147 = vcmask 64512
    %v148 = vsel %vm147, %v63, %v79
    %v149 = vsel %vm147, %v65, %v81
    %v150 = vsel %vm147, %v64, %v83
    %v151 = vsel %vm147, %v66, %v85
    %vm152 = vcmask 130048
    %v153 = vsel %vm152, %v148, %v98
    %v154 = vsel %vm152, %v149, %v100
    %v155 = vsel %vm152, %v150, %v102
    %v156 = vsel %vm152, %v151, %v104
    %vm157 = vcmask 195584
    %v158 = vsel %vm157, %v153, %v117
    %v159 = vsel %vm157, %v154, %v119
    %v160 = vsel %vm157, %v155, %v121
    %v161 = vsel %vm157, %v156, %v123
    %vm162 = vcmask 261120
    %v163 = vsel %vm162, %v158, %v136
    %v164 = vsel %vm162, %v159, %v138
    %v165 = vsel %vm162, %v160, %v140
    %v166 = vsel %vm162, %v161, %v142
    %v171 = vrot.slane %v163, 2
    %v172 = vrot.slane %v163, 4
    %v173 = vrot.slane %v163, 6
    %v174 = vrot.slane %v165, 2
    %v175 = vrot.slane %v165, 4
    %v176 = vrot.slane %v165, 6
    %v178 = vperm.slane %v36, 0
    %180 = vst [vmem:[#allocation1] ss:$4 sm:$0xff] %v163
    %s181 = scalar_lea.vmem [#allocation1], 1
    %182 = vst [vmem:[%s181] ss:$4 sm:$0xff] %v171
    %s183 = scalar_lea.vmem [#allocation1], 2
    %184 = vst [vmem:[%s183] ss:$4 sm:$0xff] %v172
    %s185 = scalar_lea.vmem [#allocation1], 3
    %186 = vst [vmem:[%s185] ss:$4 sm:$0xff] %v173
    %s187 = scalar_lea.vmem [#allocation1], 32
    %188 = vst [vmem:[%s187] ss:$4 sm:$0xff] %v164
    %s189 = scalar_lea.vmem [#allocation1], 33
    %190 = vst [vmem:[%s189] ss:$4 sm:$0xff] %v165
    %s191 = scalar_lea.vmem [#allocation1], 34
    %192 = vst [vmem:[%s191] ss:$4 sm:$0xff] %v174
    %s193 = scalar_lea.vmem [#allocation1], 35
    %194 = vst [vmem:[%s193] ss:$4 sm:$0xff] %v175
    %v195 = vld.sshfl [vmem:[#allocation1] sm:$0xff pattern:$0x73625140]
    %v196 = vld.sshfl [vmem:[#allocation1 + $0x20] sm:$0xff pattern:$0x73625140]
    %197 = vst [vmem:[#allocation1] ss:$4 sm:$0xff] %v176
    %198 = vst [vmem:[%s181] ss:$4 sm:$0xff] %v166
    %v199 = vld.sshfl [vmem:[#allocation1] sm:$0xff pattern:$0x73625140]
    %vm200 = vcmask 326656
    %v201 = vsel %vm200, %v195, 0
    %v203 = vsel %vm200, %v196, 0
    %v205 = vsel %vm200, %v199, 0
    %207 = vmatpush.msra.mxu0 0.0
    %208 = vmatpush.msra.mxu0 0.0
    %209 = vmatpush.msra.mxu0 0.0
    %210 = vmatpush.msra.mxu0 0.0
    %211 = vmatpush.msra.mxu0 0.0
    %212 = vmatpush.msra.mxu0 0.0
    %213 = vmatpush.msra.mxu0 0.0
    %214 = vmatpush.msra.mxu0 0.0
    %215 = vmatpush.msra.mxu0 0.0
    %216 = vmatpush.msra.mxu0 0.0
    %217 = vmatpush.msra.mxu0 0.0
    %218 = vmatpush.msra.mxu0 %v30
    %219 = vmatpush.msra.mxu0 %v29
    %220 = vmatpush.msra.mxu0 %v28
    %221 = vmatpush.msra.mxu0 %v27
    %222 = vmatpush.msra.mxu0 %v26
    %223 = vmatmul.f32.gmra.mxu0 %v201
    %v224 = vpop.f32.mrf.mxu0
    %v225 = vadd.f32 %v178, %v224
    %226 = vmatmul.f32.gmra.mxu0 %v203
    %v227 = vpop.f32.mrf.mxu0
    %v228 = vadd.f32 %v178, %v227
    %229 = vmatmul.f32.gmra.mxu0 %v205
    %v230 = vpop.f32.mrf.mxu0
    %v231 = vadd.f32 %v178, %v230
    %232 = vdwg.mxu0
    %v233 = vmul.f32 %v225, 0.01
    %v234 = vmul.f32 %v228, 0.01
    %v235 = vmul.f32 %v231, 0.01
    %v236 = vmax.f32 %v225, %v233
    %v237 = vmax.f32 %v228, %v234
    %v238 = vmax.f32 %v231, %v235
    %v242 = vrot.slane %v236, 2
    %v243 = vrot.slane %v236, 4
    %v244 = vrot.slane %v236, 6
    %v245 = vrot.slane %v237, 2
    %v246 = vrot.slane %v237, 4
    %v247 = vrot.slane %v237, 6
    %v248 = vrot.slane %v238, 2
    %249 = vst [vmem:[#allocation1] ss:$4 sm:$0xff] %v236
    %s250 = scalar_lea.vmem [#allocation1], 1
    %251 = vst [vmem:[%s250] ss:$4 sm:$0xff] %v242
    %s252 = scalar_lea.vmem [#allocation1], 2
    %253 = vst [vmem:[%s252] ss:$4 sm:$0xff] %v243
    %s254 = scalar_lea.vmem [#allocation1], 3
    %255 = vst [vmem:[%s254] ss:$4 sm:$0xff] %v244
    %v256 = vld.sshfl [vmem:[#allocation1] sm:$0xff pattern:$0x73625140]
    %s257 = scalar_lea.vmem [#allocation1], 32
    %258 = vst [vmem:[%s257] ss:$4 sm:$0xff] %v245
    %s259 = scalar_lea.vmem [#allocation1], 33
    %260 = vst [vmem:[%s259] ss:$4 sm:$0xff] %v246
    %s261 = scalar_lea.vmem [#allocation1], 34
    %262 = vst [vmem:[%s261] ss:$4 sm:$0xff] %v247
    %s263 = scalar_lea.vmem [#allocation1], 35
    %264 = vst [vmem:[%s263] ss:$4 sm:$0xff] %v238
    %v265 = vld.sshfl [vmem:[#allocation1 + $0x20] sm:$0xff pattern:$0x73625140]
    %268 = vst [vmem:[#allocation1] ss:$4 sm:$0xff] %v236
    %s269 = scalar_lea.vmem [#allocation1], 1
    %270 = vst [vmem:[%s269] ss:$4 sm:$0xff] %v242
    %s271 = scalar_lea.vmem [#allocation1], 2
    %272 = vst [vmem:[%s271] ss:$4 sm:$0xff] %v243
    %s273 = scalar_lea.vmem [#allocation1], 3
    %274 = vst [vmem:[%s273] ss:$4 sm:$0xff] %v244
    %s275 = scalar_lea.vmem [#allocation1], 32
    %276 = vst [vmem:[%s275] ss:$4 sm:$0xff] %v237
    %v277 = vld.sshfl [vmem:[#allocation1] sm:$0xff pattern:$0x73625140]
    %v278 = vld.sshfl [vmem:[#allocation1 + $0x20] sm:$0xff pattern:$0x73625140]
    %279 = vst [vmem:[#allocation1] ss:$4 sm:$0xff] %v245
    %280 = vst [vmem:[%s269] ss:$4 sm:$0xff] %v246
    %281 = vst [vmem:[%s271] ss:$4 sm:$0xff] %v247
    %282 = vst [vmem:[%s273] ss:$4 sm:$0xff] %v238
    %283 = vst [vmem:[%s275] ss:$4 sm:$0xff] %v248
    %v284 = vld.sshfl [vmem:[#allocation1] sm:$0xff pattern:$0x73625140]
    %v285 = vld.sshfl [vmem:[#allocation1 + $0x20] sm:$0xff pattern:$0x73625140]
    %v286 = vrot.slane %v277, 1
    %v287 = vrot.slane %v278, 1
    %v288 = vsel %vm71, %v286, %v287
    %v289 = vrot.slane %v284, 1
    %v290 = vrot.slane %v285, 1
    %v291 = vsel %vm71, %v289, %v290
    %292 = vrot.lane.b32.xlu0 %v288, 16
    %v293 = vpop.permute.xlu0 %292
    %294 = vrot.lane.b32.xlu0 %v291, 16
    %v295 = vpop.permute.xlu0 %294
    %298 = vst [vmem:[#allocation1] ss:$4 sm:$0xff] %v242
    %s299 = scalar_lea.vmem [#allocation1], 1
    %300 = vst [vmem:[%s299] ss:$4 sm:$0xff] %v243
    %s301 = scalar_lea.vmem [#allocation1], 2
    %302 = vst [vmem:[%s301] ss:$4 sm:$0xff] %v244
    %s303 = scalar_lea.vmem [#allocation1], 3
    %304 = vst [vmem:[%s303] ss:$4 sm:$0xff] %v237
    %v305 = vld.sshfl [vmem:[#allocation1] sm:$0xff pattern:$0x73625140]
    %s306 = scalar_lea.vmem [#allocation1], 32
    %307 = vst [vmem:[%s306] ss:$4 sm:$0xff] %v246
    %s308 = scalar_lea.vmem [#allocation1], 33
    %309 = vst [vmem:[%s308] ss:$4 sm:$0xff] %v247
    %s310 = scalar_lea.vmem [#allocation1], 34
    %311 = vst [vmem:[%s310] ss:$4 sm:$0xff] %v238
    %s312 = scalar_lea.vmem [#allocation1], 35
    %313 = vst [vmem:[%s312] ss:$4 sm:$0xff] %v248
    %v314 = vld.sshfl [vmem:[#allocation1 + $0x20] sm:$0xff pattern:$0x73625140]
    %315 = vrot.lane.b32.xlu0 %v305, 32
    %v316 = vpop.permute.xlu0 %315
    %317 = vrot.lane.b32.xlu0 %v314, 32
    %v318 = vpop.permute.xlu0 %317
    %v321 = vsel %vm152, %v256, %v293
    %v322 = vsel %vm152, %v265, %v295
    %v323 = vsel %vm162, %v321, %v316
    %v324 = vsel %vm162, %v322, %v318
    %v326 = vperm.slane %v50, 0
    %vm328 = vcmask 392192
    %v330 = vsel %vm328, %v323, 0
    %v333 = vsel %vm328, %v324, 0
    %335 = vmatpush.msra.mxu0 0.0
    %336 = vmatpush.msra.mxu0 0.0
    %337 = vmatpush.msra.mxu0 0.0
    %338 = vmatpush.msra.mxu0 0.0
    %339 = vmatpush.msra.mxu0 0.0
    %340 = vmatpush.msra.mxu0 0.0
    %341 = vmatpush.msra.mxu0 0.0
    %342 = vmatpush.msra.mxu0 0.0
    %343 = vmatpush.msra.mxu0 0.0
    %344 = vmatpush.msra.mxu0 0.0
    %345 = vmatpush.msra.mxu0 %v43
    %346 = vmatpush.msra.mxu0 %v42
    %347 = vmatpush.msra.mxu0 %v41
    %348 = vmatpush.msra.mxu0 %v40
    %349 = vmatpush.msra.mxu0 %v39
    %350 = vmatpush.msra.mxu0 %v38
    %351 = vmatmul.f32.gmra.mxu0 %v330
    %v352 = vpop.f32.mrf.mxu0
    %v353 = vadd.f32 %v326, %v352
    %354 = vmatmul.f32.gmra.mxu0 %v333
    %v355 = vpop.f32.mrf.mxu0
    %v356 = vadd.f32 %v326, %v355
    %357 = vdwg.mxu0
    %v358 = vtanh.pop %v353
    %v359 = vtanh.pop %v356
    %v360 = vmul.f32 %v358, 1.442695
    %v361 = vpow.pop %v360
    %v362 = vmul.f32 %v359, 1.442695
    %v363 = vpow.pop %v362
    %366 = vrot.lane.b32.xlu0 %v361, 4
    %v367 = vpop.permute.xlu0 %366
    %368 = vrot.lane.b32.xlu0 %v363, 4
    %v369 = vpop.permute.xlu0 %368
    %v372 = vmul.f32 %v24, %v367
    %v373 = vmul.f32 %v25, %v369
    %374 = vrot.lane.b32.xlu0 %v361, 124
    %v375 = vpop.permute.xlu0 %374
    %376 = vrot.lane.b32.xlu0 %v363, 124
    %v377 = vpop.permute.xlu0 %376
    %v380 = vmul.f32 %v24, %v375
    %v381 = vmul.f32 %v25, %v377
    %384 = vrot.lane.b32.xlu0 %v372, 124
    %v385 = vpop.permute.xlu0 %384
    %386 = vrot.lane.b32.xlu0 %v373, 124
    %v387 = vpop.permute.xlu0 %386
    %392 = vrot.lane.b32.xlu0 %v380, 4
    %v393 = vpop.permute.xlu0 %392
    %394 = vrot.lane.b32.xlu0 %v381, 4
    %v395 = vpop.permute.xlu0 %394
    %vm398 = vcmask 31744
    %v399 = vsel %vm398, %v385, %v393
    %v400 = vsel %vm398, %v387, %v395
    %v401 = vperm.slane %v399, 0
    %v402 = vperm.slane %v400, 0
    %v403 = vperm.slane %v399, 7
    %v404 = vperm.slane %v400, 7
    %v407 = vrot.slane %v399, 5
    %v408 = vrot.slane %v400, 5
    %v411 = vsel %vm62, %v401, %v407
    %v412 = vsel %vm62, %v402, %v408
    %v413 = vsel %vm62, %v407, %v403
    %v414 = vsel %vm62, %v408, %v404
    %v419 = vrot.slane %v411, 1
    %v420 = vrot.slane %v413, 1
    %v421 = vsel %vm71, %v419, %v420
    %v422 = vrot.slane %v412, 1
    %v423 = vrot.slane %v414, 1
    %v424 = vsel %vm71, %v422, %v423
    %425 = vrot.lane.b32.xlu0 %v421, 8
    %v426 = vpop.permute.xlu0 %425
    %427 = vrot.lane.b32.xlu0 %v420, 8
    %v428 = vpop.permute.xlu0 %427
    %429 = vrot.lane.b32.xlu0 %v424, 8
    %v430 = vpop.permute.xlu0 %429
    %431 = vrot.lane.b32.xlu0 %v423, 8
    %v432 = vpop.permute.xlu0 %431
    %v437 = vrot.slane %v411, 2
    %v438 = vrot.slane %v413, 2
    %v439 = vsel %vm90, %v437, %v438
    %v440 = vrot.slane %v412, 2
    %v441 = vrot.slane %v414, 2
    %v442 = vsel %vm90, %v440, %v441
    %443 = vrot.lane.b32.xlu0 %v439, 16
    %v444 = vpop.permute.xlu0 %443
    %445 = vrot.lane.b32.xlu0 %v438, 16
    %v446 = vpop.permute.xlu0 %445
    %447 = vrot.lane.b32.xlu0 %v442, 16
    %v448 = vpop.permute.xlu0 %447
    %449 = vrot.lane.b32.xlu0 %v441, 16
    %v450 = vpop.permute.xlu0 %449
    %v455 = vrot.slane %v411, 3
    %v456 = vrot.slane %v413, 3
    %v457 = vsel %vm109, %v455, %v456
    %v458 = vrot.slane %v412, 3
    %v459 = vrot.slane %v414, 3
    %v460 = vsel %vm109, %v458, %v459
    %461 = vrot.lane.b32.xlu0 %v457, 24
    %v462 = vpop.permute.xlu0 %461
    %463 = vrot.lane.b32.xlu0 %v456, 24
    %v464 = vpop.permute.xlu0 %463
    %465 = vrot.lane.b32.xlu0 %v460, 24
    %v466 = vpop.permute.xlu0 %465
    %467 = vrot.lane.b32.xlu0 %v459, 24
    %v468 = vpop.permute.xlu0 %467
    %v473 = vrot.slane %v411, 4
    %v474 = vrot.slane %v413, 4
    %v475 = vsel %vm128, %v473, %v474
    %v476 = vrot.slane %v412, 4
    %v477 = vrot.slane %v414, 4
    %v478 = vsel %vm128, %v476, %v477
    %479 = vrot.lane.b32.xlu0 %v475, 32
    %v480 = vpop.permute.xlu0 %479
    %481 = vrot.lane.b32.xlu0 %v474, 32
    %v482 = vpop.permute.xlu0 %481
    %483 = vrot.lane.b32.xlu0 %v478, 32
    %v484 = vpop.permute.xlu0 %483
    %485 = vrot.lane.b32.xlu0 %v477, 32
    %v486 = vpop.permute.xlu0 %485
    %v491 = vsel %vm147, %v411, %v426
    %v492 = vsel %vm147, %v413, %v428
    %v493 = vsel %vm147, %v412, %v430
    %v494 = vsel %vm147, %v414, %v432
    %v495 = vsel %vm152, %v491, %v444
    %v496 = vsel %vm152, %v492, %v446
    %v497 = vsel %vm152, %v493, %v448
    %v498 = vsel %vm152, %v494, %v450
    %v499 = vsel %vm157, %v495, %v462
    %v500 = vsel %vm157, %v496, %v464
    %v501 = vsel %vm157, %v497, %v466
    %v502 = vsel %vm157, %v498, %v468
    %v503 = vsel %vm162, %v499, %v480
    %v504 = vsel %vm162, %v500, %v482
    %v505 = vsel %vm162, %v501, %v484
    %v506 = vsel %vm162, %v502, %v486
    %v511 = vrot.slane %v503, 2
    %v512 = vrot.slane %v503, 4
    %v513 = vrot.slane %v503, 6
    %v514 = vrot.slane %v505, 2
    %v515 = vrot.slane %v505, 4
    %v516 = vrot.slane %v505, 6
    %v518 = vperm.slane %v37, 0
    %520 = vst [vmem:[#allocation1] ss:$4 sm:$0xff] %v503
    %s521 = scalar_lea.vmem [#allocation1], 1
    %522 = vst [vmem:[%s521] ss:$4 sm:$0xff] %v511
    %s523 = scalar_lea.vmem [#allocation1], 2
    %524 = vst [vmem:[%s523] ss:$4 sm:$0xff] %v512
    %s525 = scalar_lea.vmem [#allocation1], 3
    %526 = vst [vmem:[%s525] ss:$4 sm:$0xff] %v513
    %s527 = scalar_lea.vmem [#allocation1], 32
    %528 = vst [vmem:[%s527] ss:$4 sm:$0xff] %v504
    %s529 = scalar_lea.vmem [#allocation1], 33
    %530 = vst [vmem:[%s529] ss:$4 sm:$0xff] %v505
    %s531 = scalar_lea.vmem [#allocation1], 34
    %532 = vst [vmem:[%s531] ss:$4 sm:$0xff] %v514
    %s533 = scalar_lea.vmem [#allocation1], 35
    %534 = vst [vmem:[%s533] ss:$4 sm:$0xff] %v515
    %v535 = vld.sshfl [vmem:[#allocation1] sm:$0xff pattern:$0x73625140]
    %v536 = vld.sshfl [vmem:[#allocation1 + $0x20] sm:$0xff pattern:$0x73625140]
    %537 = vst [vmem:[#allocation1] ss:$4 sm:$0xff] %v516
    %538 = vst [vmem:[%s521] ss:$4 sm:$0xff] %v506
    %v539 = vld.sshfl [vmem:[#allocation1] sm:$0xff pattern:$0x73625140]
    %v540 = vsel %vm200, %v535, 0
    %v542 = vsel %vm200, %v536, 0
    %v544 = vsel %vm200, %v539, 0
    %546 = vmatpush.msra.mxu0 0.0
    %547 = vmatpush.msra.mxu0 0.0
    %548 = vmatpush.msra.mxu0 0.0
    %549 = vmatpush.msra.mxu0 0.0
    %550 = vmatpush.msra.mxu0 0.0
    %551 = vmatpush.msra.mxu0 0.0
    %552 = vmatpush.msra.mxu0 0.0
    %553 = vmatpush.msra.mxu0 0.0
    %554 = vmatpush.msra.mxu0 0.0
    %555 = vmatpush.msra.mxu0 0.0
    %556 = vmatpush.msra.mxu0 0.0
    %557 = vmatpush.msra.mxu0 %v35
    %558 = vmatpush.msra.mxu0 %v34
    %559 = vmatpush.msra.mxu0 %v33
    %560 = vmatpush.msra.mxu0 %v32
    %561 = vmatpush.msra.mxu0 %v31
    %562 = vmatmul.f32.gmra.mxu0 %v540
    %v563 = vpop.f32.mrf.mxu0
    %v564 = vadd.f32 %v518, %v563
    %565 = vmatmul.f32.gmra.mxu0 %v542
    %v566 = vpop.f32.mrf.mxu0
    %v567 = vadd.f32 %v518, %v566
    %568 = vmatmul.f32.gmra.mxu0 %v544
    %v569 = vpop.f32.mrf.mxu0
    %v570 = vadd.f32 %v518, %v569
    %571 = vdwg.mxu0
    %v572 = vmul.f32 %v564, 0.01
    %v573 = vmul.f32 %v567, 0.01
    %v574 = vmul.f32 %v570, 0.01
    %v575 = vmax.f32 %v564, %v572
    %v576 = vmax.f32 %v567, %v573
    %v577 = vmax.f32 %v570, %v574
    %v581 = vrot.slane %v575, 2
    %v582 = vrot.slane %v575, 4
    %v583 = vrot.slane %v575, 6
    %v584 = vrot.slane %v576, 2
    %v585 = vrot.slane %v576, 4
    %v586 = vrot.slane %v576, 6
    %v587 = vrot.slane %v577, 2
    %588 = vst [vmem:[#allocation1] ss:$4 sm:$0xff] %v575
    %s589 = scalar_lea.vmem [#allocation1], 1
    %590 = vst [vmem:[%s589] ss:$4 sm:$0xff] %v581
    %s591 = scalar_lea.vmem [#allocation1], 2
    %592 = vst [vmem:[%s591] ss:$4 sm:$0xff] %v582
    %s593 = scalar_lea.vmem [#allocation1], 3
    %594 = vst [vmem:[%s593] ss:$4 sm:$0xff] %v583
    %v595 = vld.sshfl [vmem:[#allocation1] sm:$0xff pattern:$0x73625140]
    %s596 = scalar_lea.vmem [#allocation1], 32
    %597 = vst [vmem:[%s596] ss:$4 sm:$0xff] %v584
    %s598 = scalar_lea.vmem [#allocation1], 33
    %599 = vst [vmem:[%s598] ss:$4 sm:$0xff] %v585
    %s600 = scalar_lea.vmem [#allocation1], 34
    %601 = vst [vmem:[%s600] ss:$4 sm:$0xff] %v586
    %s602 = scalar_lea.vmem [#allocation1], 35
    %603 = vst [vmem:[%s602] ss:$4 sm:$0xff] %v577
    %v604 = vld.sshfl [vmem:[#allocation1 + $0x20] sm:$0xff pattern:$0x73625140]
    %607 = vst [vmem:[#allocation1] ss:$4 sm:$0xff] %v575
    %s608 = scalar_lea.vmem [#allocation1], 1
    %609 = vst [vmem:[%s608] ss:$4 sm:$0xff] %v581
    %s610 = scalar_lea.vmem [#allocation1], 2
    %611 = vst [vmem:[%s610] ss:$4 sm:$0xff] %v582
    %s612 = scalar_lea.vmem [#allocation1], 3
    %613 = vst [vmem:[%s612] ss:$4 sm:$0xff] %v583
    %s614 = scalar_lea.vmem [#allocation1], 32
    %615 = vst [vmem:[%s614] ss:$4 sm:$0xff] %v576
    %v616 = vld.sshfl [vmem:[#allocation1] sm:$0xff pattern:$0x73625140]
    %v617 = vld.sshfl [vmem:[#allocation1 + $0x20] sm:$0xff pattern:$0x73625140]
    %618 = vst [vmem:[#allocation1] ss:$4 sm:$0xff] %v584
    %619 = vst [vmem:[%s608] ss:$4 sm:$0xff] %v585
    %620 = vst [vmem:[%s610] ss:$4 sm:$0xff] %v586
    %621 = vst [vmem:[%s612] ss:$4 sm:$0xff] %v577
    %622 = vst [vmem:[%s614] ss:$4 sm:$0xff] %v587
    %v623 = vld.sshfl [vmem:[#allocation1] sm:$0xff pattern:$0x73625140]
    %v624 = vld.sshfl [vmem:[#allocation1 + $0x20] sm:$0xff pattern:$0x73625140]
    %v625 = vrot.slane %v616, 1
    %v626 = vrot.slane %v617, 1
    %v627 = vsel %vm71, %v625, %v626
    %v628 = vrot.slane %v623, 1
    %v629 = vrot.slane %v624, 1
    %v630 = vsel %vm71, %v628, %v629
    %631 = vrot.lane.b32.xlu0 %v627, 16
    %v632 = vpop.permute.xlu0 %631
    %633 = vrot.lane.b32.xlu0 %v630, 16
    %v634 = vpop.permute.xlu0 %633
    %637 = vst [vmem:[#allocation1] ss:$4 sm:$0xff] %v581
    %s638 = scalar_lea.vmem [#allocation1], 1
    %639 = vst [vmem:[%s638] ss:$4 sm:$0xff] %v582
    %s640 = scalar_lea.vmem [#allocation1], 2
    %641 = vst [vmem:[%s640] ss:$4 sm:$0xff] %v583
    %s642 = scalar_lea.vmem [#allocation1], 3
    %643 = vst [vmem:[%s642] ss:$4 sm:$0xff] %v576
    %v644 = vld.sshfl [vmem:[#allocation1] sm:$0xff pattern:$0x73625140]
    %s645 = scalar_lea.vmem [#allocation1], 32
    %646 = vst [vmem:[%s645] ss:$4 sm:$0xff] %v585
    %s647 = scalar_lea.vmem [#allocation1], 33
    %648 = vst [vmem:[%s647] ss:$4 sm:$0xff] %v586
    %s649 = scalar_lea.vmem [#allocation1], 34
    %650 = vst [vmem:[%s649] ss:$4 sm:$0xff] %v577
    %s651 = scalar_lea.vmem [#allocation1], 35
    %652 = vst [vmem:[%s651] ss:$4 sm:$0xff] %v587
    %v653 = vld.sshfl [vmem:[#allocation1 + $0x20] sm:$0xff pattern:$0x73625140]
    %654 = vrot.lane.b32.xlu0 %v644, 32
    %v655 = vpop.permute.xlu0 %654
    %656 = vrot.lane.b32.xlu0 %v653, 32
    %v657 = vpop.permute.xlu0 %656
    %v660 = vsel %vm152, %v595, %v632
    %v661 = vsel %vm152, %v604, %v634
    %v662 = vsel %vm162, %v660, %v655
    %v663 = vsel %vm162, %v661, %v657
    %v665 = vperm.slane %v51, 0
    %v668 = vsel %vm328, %v662, 0
    %v671 = vsel %vm328, %v663, 0
    %673 = vmatpush.msra.mxu0 0.0
    %674 = vmatpush.msra.mxu0 0.0
    %675 = vmatpush.msra.mxu0 0.0
    %676 = vmatpush.msra.mxu0 0.0
    %677 = vmatpush.msra.mxu0 0.0
    %678 = vmatpush.msra.mxu0 0.0
    %679 = vmatpush.msra.mxu0 0.0
    %680 = vmatpush.msra.mxu0 0.0
    %681 = vmatpush.msra.mxu0 0.0
    %682 = vmatpush.msra.mxu0 0.0
    %683 = vmatpush.msra.mxu0 %v49
    %684 = vmatpush.msra.mxu0 %v48
    %685 = vmatpush.msra.mxu0 %v47
    %686 = vmatpush.msra.mxu0 %v46
    %687 = vmatpush.msra.mxu0 %v45
    %688 = vmatpush.msra.mxu0 %v44
    %689 = vmatmul.f32.gmra.mxu0 %v668
    %v690 = vpop.f32.mrf.mxu0
    %v691 = vadd.f32 %v665, %v690
    %692 = vmatmul.f32.gmra.mxu0 %v671
    %v693 = vpop.f32.mrf.mxu0
    %v694 = vadd.f32 %v665, %v693
    %695 = vdwg.mxu0
    %v696 = vtanh.pop %v691
    %v697 = vtanh.pop %v694
    %v698 = vadd.f32 %v380, %v696
    %v699 = vadd.f32 %v381, %v697
    %v700 = vsub.f32 %v372, %v696
    %v701 = vsub.f32 %v373, %v697
    %702 = vxpose.xlu0.b32.start [1/16] %v698, 128
    %703 = vxpose.xlu0.b32.cont [2/16] 0.0, 128
    %704 = vxpose.xlu0.b32.cont [3/16] 0.0, 128
    %705 = vxpose.xlu0.b32.cont [4/16] 0.0, 128
    %706 = vxpose.xlu0.b32.cont [5/16] 0.0, 128
    %707 = vxpose.xlu0.b32.cont [6/16] 0.0, 128
    %708 = vxpose.xlu0.b32.cont [7/16] 0.0, 128
    %709 = vxpose.xlu0.b32.cont [8/16] 0.0, 128
    %710 = vxpose.xlu0.b32.cont [9/16] 0.0, 128
    %711 = vxpose.xlu0.b32.cont [10/16] 0.0, 128
    %712 = vxpose.xlu0.b32.cont [11/16] 0.0, 128
    %713 = vxpose.xlu0.b32.cont [12/16] 0.0, 128
    %714 = vxpose.xlu0.b32.cont [13/16] 0.0, 128
    %715 = vxpose.xlu0.b32.cont [14/16] 0.0, 128
    %716 = vxpose.xlu0.b32.cont [15/16] 0.0, 128
    %717 = vxpose.xlu0.b32.end [16/16] 0.0, 128
    %v718 = vpop.trf.xlu0
    %v719 = vpop.trf.xlu0
    %v720 = vpop.trf.xlu0
    %v721 = vpop.trf.xlu0
    %v722 = vpop.trf.xlu0
    %v723 = vpop.trf.xlu0
    %v724 = vpop.trf.xlu0
    %v725 = vpop.trf.xlu0
    %v726 = vpop.trf.xlu0
    %v727 = vpop.trf.xlu0
    %v728 = vpop.trf.xlu0
    %v729 = vpop.trf.xlu0
    %v730 = vpop.trf.xlu0
    %v731 = vpop.trf.xlu0
    %v732 = vpop.trf.xlu0
    %v733 = vpop.trf.xlu0
    %734 = vxpose.xlu0.b32.start [1/16] %v699, 128
    %735 = vxpose.xlu0.b32.cont [2/16] 0.0, 128
    %736 = vxpose.xlu0.b32.cont [3/16] 0.0, 128
    %737 = vxpose.xlu0.b32.cont [4/16] 0.0, 128
    %738 = vxpose.xlu0.b32.cont [5/16] 0.0, 128
    %739 = vxpose.xlu0.b32.cont [6/16] 0.0, 128
    %740 = vxpose.xlu0.b32.cont [7/16] 0.0, 128
    %741 = vxpose.xlu0.b32.cont [8/16] 0.0, 128
    %742 = vxpose.xlu0.b32.cont [9/16] 0.0, 128
    %743 = vxpose.xlu0.b32.cont [10/16] 0.0, 128
    %744 = vxpose.xlu0.b32.cont [11/16] 0.0, 128
    %745 = vxpose.xlu0.b32.cont [12/16] 0.0, 128
    %746 = vxpose.xlu0.b32.cont [13/16] 0.0, 128
    %747 = vxpose.xlu0.b32.cont [14/16] 0.0, 128
    %748 = vxpose.xlu0.b32.cont [15/16] 0.0, 128
    %749 = vxpose.xlu0.b32.end [16/16] 0.0, 128
    %v750 = vpop.trf.xlu0
    %v751 = vpop.trf.xlu0
    %v752 = vpop.trf.xlu0
    %v753 = vpop.trf.xlu0
    %v754 = vpop.trf.xlu0
    %v755 = vpop.trf.xlu0
    %v756 = vpop.trf.xlu0
    %v757 = vpop.trf.xlu0
    %v758 = vpop.trf.xlu0
    %v759 = vpop.trf.xlu0
    %v760 = vpop.trf.xlu0
    %v761 = vpop.trf.xlu0
    %v762 = vpop.trf.xlu0
    %v763 = vpop.trf.xlu0
    %v764 = vpop.trf.xlu0
    %v765 = vpop.trf.xlu0
    %vm766 = vcmask 60416
    %767 = vst.msk [vmem:[#allocation2] sm:$0xf] %vm766, %v718
    %768 = vst.msk [vmem:[#allocation2 + $0x4] sm:$0xf] %vm766, %v750
    %771 = vrot.lane.b32.xlu0 %v700, 124
    %v772 = vpop.permute.xlu0 %771
    %773 = vrot.lane.b32.xlu0 %v701, 124
    %v774 = vpop.permute.xlu0 %773
    %777 = vxpose.xlu0.b32.start [1/16] %v772, 128
    %778 = vxpose.xlu0.b32.cont [2/16] 0.0, 128
    %779 = vxpose.xlu0.b32.cont [3/16] 0.0, 128
    %780 = vxpose.xlu0.b32.cont [4/16] 0.0, 128
    %781 = vxpose.xlu0.b32.cont [5/16] 0.0, 128
    %782 = vxpose.xlu0.b32.cont [6/16] 0.0, 128
    %783 = vxpose.xlu0.b32.cont [7/16] 0.0, 128
    %784 = vxpose.xlu0.b32.cont [8/16] 0.0, 128
    %785 = vxpose.xlu0.b32.cont [9/16] 0.0, 128
    %786 = vxpose.xlu0.b32.cont [10/16] 0.0, 128
    %787 = vxpose.xlu0.b32.cont [11/16] 0.0, 128
    %788 = vxpose.xlu0.b32.cont [12/16] 0.0, 128
    %789 = vxpose.xlu0.b32.cont [13/16] 0.0, 128
    %790 = vxpose.xlu0.b32.cont [14/16] 0.0, 128
    %791 = vxpose.xlu0.b32.cont [15/16] 0.0, 128
    %792 = vxpose.xlu0.b32.end [16/16] 0.0, 128
    %v793 = vpop.trf.xlu0
    %v794 = vpop.trf.xlu0
    %v795 = vpop.trf.xlu0
    %v796 = vpop.trf.xlu0
    %v797 = vpop.trf.xlu0
    %v798 = vpop.trf.xlu0
    %v799 = vpop.trf.xlu0
    %v800 = vpop.trf.xlu0
    %v801 = vpop.trf.xlu0
    %v802 = vpop.trf.xlu0
    %v803 = vpop.trf.xlu0
    %v804 = vpop.trf.xlu0
    %v805 = vpop.trf.xlu0
    %v806 = vpop.trf.xlu0
    %v807 = vpop.trf.xlu0
    %v808 = vpop.trf.xlu0
    %809 = vxpose.xlu0.b32.start [1/16] %v774, 128
    %810 = vxpose.xlu0.b32.cont [2/16] 0.0, 128
    %811 = vxpose.xlu0.b32.cont [3/16] 0.0, 128
    %812 = vxpose.xlu0.b32.cont [4/16] 0.0, 128
    %813 = vxpose.xlu0.b32.cont [5/16] 0.0, 128
    %814 = vxpose.xlu0.b32.cont [6/16] 0.0, 128
    %815 = vxpose.xlu0.b32.cont [7/16] 0.0, 128
    %816 = vxpose.xlu0.b32.cont [8/16] 0.0, 128
    %817 = vxpose.xlu0.b32.cont [9/16] 0.0, 128
    %818 = vxpose.xlu0.b32.cont [10/16] 0.0, 128
    %819 = vxpose.xlu0.b32.cont [11/16] 0.0, 128
    %820 = vxpose.xlu0.b32.cont [12/16] 0.0, 128
    %821 = vxpose.xlu0.b32.cont [13/16] 0.0, 128
    %822 = vxpose.xlu0.b32.cont [14/16] 0.0, 128
    %823 = vxpose.xlu0.b32.cont [15/16] 0.0, 128
    %824 = vxpose.xlu0.b32.end [16/16] 0.0, 128
    %v825 = vpop.trf.xlu0
    %v826 = vpop.trf.xlu0
    %v827 = vpop.trf.xlu0
    %v828 = vpop.trf.xlu0
    %v829 = vpop.trf.xlu0
    %v830 = vpop.trf.xlu0
    %v831 = vpop.trf.xlu0
    %v832 = vpop.trf.xlu0
    %v833 = vpop.trf.xlu0
    %v834 = vpop.trf.xlu0
    %v835 = vpop.trf.xlu0
    %v836 = vpop.trf.xlu0
    %v837 = vpop.trf.xlu0
    %v838 = vpop.trf.xlu0
    %v839 = vpop.trf.xlu0
    %v840 = vpop.trf.xlu0
    %841 = vst.msk [vmem:[#allocation4] sm:$0xf] %vm766, %v793
    %842 = vst.msk [vmem:[#allocation4 + $0x4] sm:$0xf] %vm766, %v825
    // Predicated region
    $region22: #{tpu_custom_call.1} parent=1 // pred_check
      _
    $region23: #{tpu_custom_call.1} parent=1 // pred_check_branch
      %844 = sbr.rel (0) target = $region25
    $region24: #{tpu_custom_call.1} parent=1 // pred_region
      %846 = vsyncadd [#allocation3], 0
      %s847 = sshll.u32 [#allocation2], 4
      %s848 = int_to_ptr.vmem [resolvable:$true] %s847
      %s849 = sshll.u32 %s5, 4
      %s850 = int_to_ptr.hbm [resolvable:$true] %s849
      %855 = dma.vmem_to_hbm [thread:$0]  %s848, 128, %s850, [#allocation3], 64, 64, 4
    $region25: #{tpu_custom_call.1} parent=1 // pred_fallthru
      _
    // Predicated region
    $region26: #{tpu_custom_call.1} parent=1 // pred_check
      _
    $region27: #{tpu_custom_call.1} parent=1 // pred_check_branch
      %857 = sbr.rel (0) target = $region29
    $region28: #{tpu_custom_call.1} parent=1 // pred_region
      %859 = vsyncadd [#allocation5], 0
      %s860 = sshll.u32 [#allocation4], 4
      %s861 = int_to_ptr.vmem [resolvable:$true] %s860
      %s862 = sshll.u32 %s6, 4
      %s863 = int_to_ptr.hbm [resolvable:$true] %s862
      %868 = dma.vmem_to_hbm [thread:$0]  %s861, 128, %s863, [#allocation5], 64, 64, 4
    $region29: #{tpu_custom_call.1} parent=1 // pred_fallthru
      _
    // Predicated region
    $region30: #{tpu_custom_call.1} parent=1 // pred_check
      _
    $region31: #{tpu_custom_call.1} parent=1 // pred_check_branch
      %870 = sbr.rel (0) target = $region33
    $region32: #{tpu_custom_call.1} parent=1 // pred_region
      %872 = dma.done [#allocation3], 128
    $region33: #{tpu_custom_call.1} parent=1 // pred_fallthru
      _
    // Predicated region
    $region34: #{tpu_custom_call.1} parent=1 // pred_check
      _
    $region35: #{tpu_custom_call.1} parent=1 // pred_check_branch
      %874 = sbr.rel (0) target = $region37
    $region36: #{tpu_custom_call.1} parent=1 // pred_region
      %876 = dma.done [#allocation5], 128
    $region37: #{tpu_custom_call.1} parent=1 // pred_fallthru
      _
    %877 = vsyncpa [#allocation3], 1
    %878 = vsyncpa [#allocation5], 1

</llo_original>
